<compile_context>
chip_gen: v5e
topology: v5e:2x2
jax: 0.10.0
libtpu: 0.0.40
codegen_flags: <defaults>
</compile_context>

<pallas_src>
import jax
import jax.numpy as jnp
from jax.experimental import pallas as pl
from jax.experimental.pallas import tpu as pltpu


def _round_up(x, m):
    return (x + m - 1) // m * m


def san_kernel(
    # inputs
    ques_ref,      # (TB, D)        VMEM
    img_ref,       # (TB, TS, D)    VMEM (streamed over the S grid axis)
    wqa_ref,       # (1, D, A_pad)  VMEM (selected by hop)
    bqa_ref,       # (1, 1, A_pad)  VMEM
    wia_ref,       # (1, D, A_pad)  VMEM
    wp_ref,        # (1, 1, A_pad)  VMEM (W_p stored as a row vector)
    bp_ref,        # (2,)           SMEM (scalar bias of W_p, per hop)
    wu_ref,        # (D, O_pad)     VMEM (resident)
    bu_ref,        # (1, O_pad)     VMEM (resident)
    # output
    out_ref,       # (TB, O_pad)    VMEM
    # scratch (persists across grid steps)
    u_sc,          # (TB, D)      running question state (ques -> u1 -> u2)
    qemb_sc,       # (TB, A_pad)  per-hop question projection
    m_sc,          # (TB, 1)      online-softmax running max
    l_sc,          # (TB, 1)      online-softmax running denominator
    acc_sc,        # (TB, D)      online-softmax weighted-sum accumulator
):
    hop = pl.program_id(1)
    s = pl.program_id(2)
    last_hop = pl.num_programs(1) - 1
    last_s = pl.num_programs(2) - 1

    # ---- per-hop initialisation (first image tile of each hop) ----
    @pl.when(s == 0)
    def _init_hop():
        @pl.when(hop == 0)
        def _():
            u_sc[...] = ques_ref[...]
        # question/state projection for this hop (stays resident across S tiles)
        qemb_sc[...] = (
            jnp.dot(u_sc[...], wqa_ref[0], preferred_element_type=jnp.float32)
            + bqa_ref[0])
        m_sc[...] = jnp.full(m_sc.shape, -jnp.inf, dtype=m_sc.dtype)
        l_sc[...] = jnp.zeros(l_sc.shape, dtype=l_sc.dtype)
        acc_sc[...] = jnp.zeros(acc_sc.shape, dtype=acc_sc.dtype)

    # ---- streaming attention over this image tile (online softmax) ----
    img = img_ref[...]                                        # (TB, TS, D)
    tb, ts, d = img.shape
    # tall (TB*TS, D) @ (D, A) matmul keeps the MXU sublanes full
    i_emb = jnp.dot(img.reshape(tb * ts, d), wia_ref[0],
                    preferred_element_type=jnp.float32).reshape(tb, ts, -1)
    h = jnp.tanh(i_emb + qemb_sc[...][:, None, :])            # (TB, TS, A_pad)
    # A -> 1 projection as a VPU multiply + lane reduce (avoids an N=1 matmul);
    # padded A columns are exact zeros and do not contribute.
    logits = jnp.sum(h * wp_ref[0], axis=-1) + bp_ref[hop]    # (TB, TS)

    m_prev = m_sc[...]
    m_new = jnp.maximum(m_prev, jnp.max(logits, axis=-1, keepdims=True))
    alpha = jnp.exp(m_prev - m_new)                           # (TB, 1)
    p = jnp.exp(logits - m_new)                               # (TB, TS)
    l_sc[...] = alpha * l_sc[...] + jnp.sum(p, axis=-1, keepdims=True)
    acc_sc[...] = alpha * acc_sc[...] + jnp.sum(p[:, :, None] * img, axis=1)
    m_sc[...] = m_new

    # ---- finalize this hop; emit the classifier after the last hop ----
    @pl.when(s == last_s)
    def _finalize_hop():
        att = acc_sc[...] / l_sc[...]                         # (TB, D)
        u_sc[...] = u_sc[...] + att

        @pl.when(hop == last_hop)
        def _emit():
            out_ref[...] = (
                jnp.dot(u_sc[...], wu_ref[...],
                        preferred_element_type=jnp.float32) + bu_ref[...])


def san_forward(ques_feats, img_feats, params, *, b_tile=8, s_tile=None,
                interpret=False):
    """Run the SAN forward pass with a tiled Pallas kernel."""
    B, D = ques_feats.shape
    Bi, S, Di = img_feats.shape
    assert Bi == B and Di == D
    A = params['wqa1'].shape[1]
    O = params['wu'].shape[1]

    # lane-dense padding (last dims -> multiples of 128)
    A_pad = _round_up(A, 128)
    O_pad = _round_up(O, 128)

    # batch tile: multiple of 8 sublanes; pad batch with zero rows (sliced off)
    TB = _round_up(min(b_tile, _round_up(B, 8)), 8)
    B_pad = _round_up(B, TB)

    # image-sequence tile must divide S (zero-padding S would corrupt softmax)
    if s_tile is None:
        TS = S
        for cand in (512, 256, 128, 64, 32, 16, 8):
            if S % cand == 0:
                TS = cand
                break
    else:
        TS = s_tile
    assert S % TS == 0, "s_tile must divide the image sequence length"

    def pad_last(x, n):
        p = n - x.shape[-1]
        return x if p == 0 else jnp.pad(x, [(0, 0)] * (x.ndim - 1) + [(0, p)])

    # stack the two hops' weights -> selected by the hop grid axis
    wqa = jnp.stack([pad_last(params['wqa1'], A_pad),
                     pad_last(params['wqa2'], A_pad)])            # (2, D, A_pad)
    bqa = jnp.stack([pad_last(params['bqa1'], A_pad),
                     pad_last(params['bqa2'], A_pad)])            # (2, 1, A_pad)
    wia = jnp.stack([pad_last(params['wia1'], A_pad),
                     pad_last(params['wia2'], A_pad)])            # (2, D, A_pad)
    wp = jnp.stack([pad_last(params['wp1'].T, A_pad),
                    pad_last(params['wp2'].T, A_pad)])            # (2, 1, A_pad)
    bp = jnp.concatenate([params['bp1'].reshape(-1),
                          params['bp2'].reshape(-1)]).astype(jnp.float32)  # (2,)
    wu = pad_last(params['wu'], O_pad)                            # (D, O_pad)
    bu = pad_last(params['bu'], O_pad)                            # (1, O_pad)

    ques_p = jnp.pad(ques_feats, ((0, B_pad - B), (0, 0)))
    img_p = jnp.pad(img_feats, ((0, B_pad - B), (0, 0), (0, 0)))

    grid = (B_pad // TB, 2, S // TS)

    in_specs = [
        pl.BlockSpec((TB, D), lambda b, h, s: (b, 0)),             # ques
        pl.BlockSpec((TB, TS, D), lambda b, h, s: (b, s, 0)),      # img (streamed)
        pl.BlockSpec((1, D, A_pad), lambda b, h, s: (h, 0, 0)),    # W_qa
        pl.BlockSpec((1, 1, A_pad), lambda b, h, s: (h, 0, 0)),    # b_qa
        pl.BlockSpec((1, D, A_pad), lambda b, h, s: (h, 0, 0)),    # W_ia
        pl.BlockSpec((1, 1, A_pad), lambda b, h, s: (h, 0, 0)),    # W_p (row vec)
        pl.BlockSpec(memory_space=pltpu.MemorySpace.SMEM),         # b_p scalars
        pl.BlockSpec((D, O_pad), lambda b, h, s: (0, 0)),          # W_u (resident)
        pl.BlockSpec((1, O_pad), lambda b, h, s: (0, 0)),          # b_u (resident)
    ]
    out_spec = pl.BlockSpec((TB, O_pad), lambda b, h, s: (b, 0))

    scratch = [
        pltpu.VMEM((TB, D), jnp.float32),        # u_sc
        pltpu.VMEM((TB, A_pad), jnp.float32),    # qemb_sc
        pltpu.VMEM((TB, 1), jnp.float32),        # m_sc
        pltpu.VMEM((TB, 1), jnp.float32),        # l_sc
        pltpu.VMEM((TB, D), jnp.float32),        # acc_sc
    ]

    cost = pl.CostEstimate(
        flops=int(2 * (2 * B * S * D * A + 2 * B * D * A
                       + 2 * B * S * A + 2 * B * S * D) + 2 * B * D * O),
        transcendentals=int(2 * (B * S * A + B * S)),
        bytes_accessed=int(4 * (B * D + 2 * B * S * D + B * O
                                + 2 * (2 * D * A + A + 1) + D * O + O)),
    )

    out_padded = pl.pallas_call(
        san_kernel,
        out_shape=jax.ShapeDtypeStruct((B_pad, O_pad), jnp.float32),
        grid_spec=pltpu.PrefetchScalarGridSpec(
            num_scalar_prefetch=0,
            grid=grid,
            in_specs=in_specs,
            out_specs=out_spec,
            scratch_shapes=scratch),
        compiler_params=pltpu.CompilerParams(
            dimension_semantics=("parallel", "arbitrary", "arbitrary"),
            vmem_limit_bytes=32 * 1024 * 1024),
        cost_estimate=cost,
        interpret=interpret,
    )(ques_p, img_p, wqa, bqa, wia, wp, bp, wu, bu)

    return out_padded[:B, :O]


def make_params(key, input_size, att_size, output_size):
    """Deterministic parameter init (nn.Linear shapes, stored transposed)."""
    ks = jax.random.split(key, 10)
    scale = 0.1

    def w(k, shape):
        return scale * jax.random.normal(k, shape, dtype=jnp.float32)

    return {
        'wqa1': w(ks[0], (input_size, att_size)),
        'bqa1': w(ks[1], (1, att_size)),
        'wia1': w(ks[2], (input_size, att_size)),
        'wp1': w(ks[3], (att_size, 1)),
        'bp1': jnp.full((1, 1), 0.05, dtype=jnp.float32),
        'wqa2': w(ks[4], (input_size, att_size)),
        'bqa2': w(ks[5], (1, att_size)),
        'wia2': w(ks[6], (input_size, att_size)),
        'wp2': w(ks[7], (att_size, 1)),
        'bp2': jnp.full((1, 1), -0.05, dtype=jnp.float32),
        'wu': w(ks[8], (input_size, output_size)),
        'bu': w(ks[9], (1, output_size)),
    }


def san_reference(ques, img, p):
    """Pure-JAX reference mirroring the PyTorch forward exactly."""
    hp = jax.lax.Precision.HIGHEST
    qe1 = jnp.dot(ques, p['wqa1'], precision=hp) + p['bqa1']
    ie1 = jnp.einsum('bsd,da->bsa', img, p['wia1'], precision=hp)
    h1 = jnp.sum(jnp.tanh(ie1 + qe1[:, None, :]) * p['wp1'][:, 0], axis=-1) \
        + p['bp1'][0, 0]
    a1 = jax.nn.softmax(h1, axis=1)
    u1 = ques + jnp.einsum('bs,bsd->bd', a1, img, precision=hp)

    qe2 = jnp.dot(u1, p['wqa2'], precision=hp) + p['bqa2']
    ie2 = jnp.einsum('bsd,da->bsa', img, p['wia2'], precision=hp)
    h2 = jnp.sum(jnp.tanh(ie2 + qe2[:, None, :]) * p['wp2'][:, 0], axis=-1) \
        + p['bp2'][0, 0]
    a2 = jax.nn.softmax(h2, axis=1)
    u2 = u1 + jnp.einsum('bs,bsd->bd', a2, img, precision=hp)
    return jnp.dot(u2, p['wu'], precision=hp) + p['bu']


if __name__ == "__main__":
    # Small shapes consistent with the module's forward.
    B = 2     # batch
    D = 32    # input_size (question / image feature dim)
    S = 8     # img_seq_size (number of image regions)
    A = 16    # att_size
    O = 10    # output_size

    key = jax.random.PRNGKey(0)
    k_q, k_i, k_p = jax.random.split(key, 3)

    ques_feats = jax.random.normal(k_q, (B, D), dtype=jnp.float32)
    img_feats = jax.random.normal(k_i, (B, S, D), dtype=jnp.float32)
    params = make_params(k_p, D, A, O)

    out = san_forward(ques_feats, img_feats, params)
    out = jax.block_until_ready(out)

    ref = san_reference(ques_feats, img_feats, params)
    assert out.shape == (B, O)
    max_err = float(jnp.max(jnp.abs(out - ref)))
    assert jnp.allclose(out, ref, atol=1e-4, rtol=1e-4), \
        f"mismatch vs JAX reference (max abs err = {max_err})"

    print("KERNEL_OK")
</pallas_src>

<mosaic_0001>
module attributes {stable_mosaic.version = 11 : i64} {
  func.func @san_kernel(%arg0: i32, %arg1: i32, %arg2: i32, %arg3: memref<8x32xf32, #tpu.memory_space<vmem>>, %arg4: memref<8x8x32xf32, #tpu.memory_space<vmem>>, %arg5: memref<1x32x128xf32, #tpu.memory_space<vmem>>, %arg6: memref<1x1x128xf32, #tpu.memory_space<vmem>>, %arg7: memref<1x32x128xf32, #tpu.memory_space<vmem>>, %arg8: memref<1x1x128xf32, #tpu.memory_space<vmem>>, %arg9: memref<2xf32, #tpu.memory_space<smem>>, %arg10: memref<32x128xf32, #tpu.memory_space<vmem>>, %arg11: memref<1x128xf32, #tpu.memory_space<vmem>>, %arg12: memref<8x128xf32, #tpu.memory_space<vmem>>, %arg13: memref<8x32xf32, #tpu.memory_space<vmem>>, %arg14: memref<8x128xf32, #tpu.memory_space<vmem>>, %arg15: memref<8x1xf32, #tpu.memory_space<vmem>>, %arg16: memref<8x1xf32, #tpu.memory_space<vmem>>, %arg17: memref<8x32xf32, #tpu.memory_space<vmem>>) attributes {dimension_semantics = [#tpu.dimension_semantics<parallel>, #tpu.dimension_semantics<arbitrary>, #tpu.dimension_semantics<arbitrary>], iteration_bounds = array<i64: 1, 2, 1>, scalar_prefetch = 0 : i64, scratch_operands = 5 : i64, tpu.core_type = #tpu.core_type<tc>, window_params = [{transform_indices = @transform_0, window_bounds = array<i64: 8, 32>}, {transform_indices = @transform_1, window_bounds = array<i64: 8, 8, 32>}, {transform_indices = @transform_2, window_bounds = array<i64: 1, 32, 128>}, {transform_indices = @transform_3, window_bounds = array<i64: 1, 1, 128>}, {transform_indices = @transform_4, window_bounds = array<i64: 1, 32, 128>}, {transform_indices = @transform_5, window_bounds = array<i64: 1, 1, 128>}, {transform_indices = @transform_6, window_bounds = array<i64: 2>}, {pipeline_mode = #tpu.pipeline_mode<synchronous>, transform_indices = @transform_7, window_bounds = array<i64: 32, 128>}, {pipeline_mode = #tpu.pipeline_mode<synchronous>, transform_indices = @transform_8, window_bounds = array<i64: 1, 128>}, {transform_indices = @transform_9, window_bounds = array<i64: 8, 128>}]} {
    %c0_i32 = arith.constant 0 : i32
    %0 = arith.cmpi eq, %arg2, %c0_i32 : i32
    %1 = arith.extui %0 : i1 to i32
    %c0_i32_0 = arith.constant 0 : i32
    %2 = arith.cmpi ne, %1, %c0_i32_0 : i32
    scf.if %2 {
      %c0_i32_29 = arith.constant 0 : i32
      %52 = arith.cmpi eq, %arg1, %c0_i32_29 : i32
      %53 = arith.extui %52 : i1 to i32
      %c0_i32_30 = arith.constant 0 : i32
      %54 = arith.cmpi ne, %53, %c0_i32_30 : i32
      scf.if %54 {
        %c0_51 = arith.constant 0 : index
        %c0_52 = arith.constant 0 : index
        %70 = vector.load %arg3[%c0_51, %c0_52] : memref<8x32xf32, #tpu.memory_space<vmem>>, vector<8x32xf32>
        %c0_53 = arith.constant 0 : index
        %c0_54 = arith.constant 0 : index
        %71 = vector.load %arg13[%c0_53, %c0_54] : memref<8x32xf32, #tpu.memory_space<vmem>>, vector<8x32xf32>
        tpu.vector_store %arg13[%c0_53, %c0_54], %70 {strides = array<i32>} : memref<8x32xf32, #tpu.memory_space<vmem>>, vector<8x32xf32>,
      } else {
      }
      %c0_31 = arith.constant 0 : index
      %c0_32 = arith.constant 0 : index
      %55 = vector.load %arg13[%c0_31, %c0_32] : memref<8x32xf32, #tpu.memory_space<vmem>>, vector<8x32xf32>
      %c0_33 = arith.constant 0 : index
      %c0_34 = arith.constant 0 : index
      %c0_35 = arith.constant 0 : index
      %56 = vector.load %arg5[%c0_33, %c0_34, %c0_35] : memref<1x32x128xf32, #tpu.memory_space<vmem>>, vector<1x32x128xf32>
      %57 = vector.shape_cast %56 : vector<1x32x128xf32> to vector<32x128xf32>
      %cst_36 = arith.constant dense<0.000000e+00> : vector<8x128xf32>
      %58 = tpu.matmul %55, %57, %cst_36 {dimension_numbers = #tpu.dot_dimension_numbers<[1], [0], [0], [1], [0, 0, 1, 1], [], []>} : vector<8x32xf32>, vector<32x128xf32>, vector<8x128xf32> -> vector<8x128xf32>
      %c0_37 = arith.constant 0 : index
      %c0_38 = arith.constant 0 : index
      %c0_39 = arith.constant 0 : index
      %59 = vector.load %arg6[%c0_37, %c0_38, %c0_39] : memref<1x1x128xf32, #tpu.memory_space<vmem>>, vector<1x1x128xf32>
      %60 = vector.shape_cast %59 : vector<1x1x128xf32> to vector<1x128xf32>
      %61 = vector.broadcast %60 : vector<1x128xf32> to vector<8x128xf32>
      %62 = arith.addf %58, %61 : vector<8x128xf32>
      %c0_40 = arith.constant 0 : index
      %c0_41 = arith.constant 0 : index
      %63 = vector.load %arg14[%c0_40, %c0_41] : memref<8x128xf32, #tpu.memory_space<vmem>>, vector<8x128xf32>
      tpu.vector_store %arg14[%c0_40, %c0_41], %62 {strides = array<i32>} : memref<8x128xf32, #tpu.memory_space<vmem>>, vector<8x128xf32>,
      %cst_42 = arith.constant 0xFF800000 : f32
      %64 = vector.broadcast %cst_42 : f32 to vector<8x1xf32>
      %c0_43 = arith.constant 0 : index
      %c0_44 = arith.constant 0 : index
      %65 = vector.load %arg15[%c0_43, %c0_44] : memref<8x1xf32, #tpu.memory_space<vmem>>, vector<8x1xf32>
      tpu.vector_store %arg15[%c0_43, %c0_44], %64 {strides = array<i32>} : memref<8x1xf32, #tpu.memory_space<vmem>>, vector<8x1xf32>,
      %cst_45 = arith.constant 0.000000e+00 : f32
      %66 = vector.broadcast %cst_45 : f32 to vector<8x1xf32>
      %c0_46 = arith.constant 0 : index
      %c0_47 = arith.constant 0 : index
      %67 = vector.load %arg16[%c0_46, %c0_47] : memref<8x1xf32, #tpu.memory_space<vmem>>, vector<8x1xf32>
      tpu.vector_store %arg16[%c0_46, %c0_47], %66 {strides = array<i32>} : memref<8x1xf32, #tpu.memory_space<vmem>>, vector<8x1xf32>,
      %cst_48 = arith.constant 0.000000e+00 : f32
      %68 = vector.broadcast %cst_48 : f32 to vector<8x32xf32>
      %c0_49 = arith.constant 0 : index
      %c0_50 = arith.constant 0 : index
      %69 = vector.load %arg17[%c0_49, %c0_50] : memref<8x32xf32, #tpu.memory_space<vmem>>, vector<8x32xf32>
      tpu.vector_store %arg17[%c0_49, %c0_50], %68 {strides = array<i32>} : memref<8x32xf32, #tpu.memory_space<vmem>>, vector<8x32xf32>,
    } else {
    }
    %c0 = arith.constant 0 : index
    %c0_1 = arith.constant 0 : index
    %c0_2 = arith.constant 0 : index
    %3 = vector.load %arg4[%c0, %c0_1, %c0_2] : memref<8x8x32xf32, #tpu.memory_space<vmem>>, vector<8x8x32xf32>
    %4 = vector.shape_cast %3 : vector<8x8x32xf32> to vector<64x32xf32>
    %c0_3 = arith.constant 0 : index
    %c0_4 = arith.constant 0 : index
    %c0_5 = arith.constant 0 : index
    %5 = vector.load %arg7[%c0_3, %c0_4, %c0_5] : memref<1x32x128xf32, #tpu.memory_space<vmem>>, vector<1x32x128xf32>
    %6 = vector.shape_cast %5 : vector<1x32x128xf32> to vector<32x128xf32>
    %cst = arith.constant dense<0.000000e+00> : vector<64x128xf32>
    %7 = tpu.matmul %4, %6, %cst {dimension_numbers = #tpu.dot_dimension_numbers<[1], [0], [0], [1], [0, 0, 1, 1], [], []>} : vector<64x32xf32>, vector<32x128xf32>, vector<64x128xf32> -> vector<64x128xf32>
    %8 = vector.shape_cast %7 : vector<64x128xf32> to vector<8x8x128xf32>
    %c0_6 = arith.constant 0 : index
    %c0_7 = arith.constant 0 : index
    %9 = vector.load %arg14[%c0_6, %c0_7] : memref<8x128xf32, #tpu.memory_space<vmem>>, vector<8x128xf32>
    %10 = vector.shape_cast %9 : vector<8x128xf32> to vector<8x1x128xf32>
    %11 = vector.broadcast %10 : vector<8x1x128xf32> to vector<8x8x128xf32>
    %12 = arith.addf %8, %11 : vector<8x8x128xf32>
    %13 = math.tanh %12 : vector<8x8x128xf32>
    %c0_8 = arith.constant 0 : index
    %c0_9 = arith.constant 0 : index
    %c0_10 = arith.constant 0 : index
    %14 = vector.load %arg8[%c0_8, %c0_9, %c0_10] : memref<1x1x128xf32, #tpu.memory_space<vmem>>, vector<1x1x128xf32>
    %15 = vector.shape_cast %14 : vector<1x1x128xf32> to vector<1x128xf32>
    %16 = vector.shape_cast %15 : vector<1x128xf32> to vector<1x1x128xf32>
    %17 = vector.broadcast %16 : vector<1x1x128xf32> to vector<8x8x128xf32>
    %18 = arith.mulf %13, %17 : vector<8x8x128xf32>
    %cst_11 = arith.constant dense<0.000000e+00> : vector<8x8xf32>
    %19 = vector.multi_reduction <add>, %18, %cst_11 [2] : vector<8x8x128xf32> to vector<8x8xf32>
    %20 = arith.index_cast %arg1 : i32 to index
    %21 = memref.load %arg9[%20] : memref<2xf32, #tpu.memory_space<smem>>
    %22 = vector.broadcast %21 : f32 to vector<8x8xf32>
    %23 = arith.addf %19, %22 : vector<8x8xf32>
    %c0_12 = arith.constant 0 : index
    %c0_13 = arith.constant 0 : index
    %24 = vector.load %arg15[%c0_12, %c0_13] : memref<8x1xf32, #tpu.memory_space<vmem>>, vector<8x1xf32>
    %cst_14 = arith.constant dense<0xFF800000> : vector<8xf32>
    %25 = vector.multi_reduction <maximumf>, %23, %cst_14 [1] : vector<8x8xf32> to vector<8xf32>
    %26 = vector.shape_cast %25 : vector<8xf32> to vector<8x1xf32>
    %27 = arith.maximumf %24, %26 : vector<8x1xf32>
    %28 = arith.subf %24, %27 : vector<8x1xf32>
    %29 = math.exp %28 : vector<8x1xf32>
    %30 = vector.broadcast %27 : vector<8x1xf32> to vector<8x8xf32>
    %31 = arith.subf %23, %30 : vector<8x8xf32>
    %32 = math.exp %31 : vector<8x8xf32>
    %c0_15 = arith.constant 0 : index
    %c0_16 = arith.constant 0 : index
    %33 = vector.load %arg16[%c0_15, %c0_16] : memref<8x1xf32, #tpu.memory_space<vmem>>, vector<8x1xf32>
    %34 = arith.mulf %29, %33 : vector<8x1xf32>
    %cst_17 = arith.constant dense<0.000000e+00> : vector<8xf32>
    %35 = vector.multi_reduction <add>, %32, %cst_17 [1] : vector<8x8xf32> to vector<8xf32>
    %36 = vector.shape_cast %35 : vector<8xf32> to vector<8x1xf32>
    %37 = arith.addf %34, %36 : vector<8x1xf32>
    %c0_18 = arith.constant 0 : index
    %c0_19 = arith.constant 0 : index
    %38 = vector.load %arg16[%c0_18, %c0_19] : memref<8x1xf32, #tpu.memory_space<vmem>>, vector<8x1xf32>
    tpu.vector_store %arg16[%c0_18, %c0_19], %37 {strides = array<i32>} : memref<8x1xf32, #tpu.memory_space<vmem>>, vector<8x1xf32>,
    %c0_20 = arith.constant 0 : index
    %c0_21 = arith.constant 0 : index
    %39 = vector.load %arg17[%c0_20, %c0_21] : memref<8x32xf32, #tpu.memory_space<vmem>>, vector<8x32xf32>
    %40 = vector.broadcast %29 : vector<8x1xf32> to vector<8x32xf32>
    %41 = arith.mulf %40, %39 : vector<8x32xf32>
    %42 = vector.shape_cast %32 : vector<8x8xf32> to vector<8x8x1xf32>
    %43 = vector.broadcast %42 : vector<8x8x1xf32> to vector<8x8x32xf32>
    %44 = arith.mulf %43, %3 : vector<8x8x32xf32>
    %cst_22 = arith.constant dense<0.000000e+00> : vector<8x32xf32>
    %45 = vector.multi_reduction <add>, %44, %cst_22 [1] : vector<8x8x32xf32> to vector<8x32xf32>
    %46 = arith.addf %41, %45 : vector<8x32xf32>
    %c0_23 = arith.constant 0 : index
    %c0_24 = arith.constant 0 : index
    %47 = vector.load %arg17[%c0_23, %c0_24] : memref<8x32xf32, #tpu.memory_space<vmem>>, vector<8x32xf32>
    tpu.vector_store %arg17[%c0_23, %c0_24], %46 {strides = array<i32>} : memref<8x32xf32, #tpu.memory_space<vmem>>, vector<8x32xf32>,
    %c0_25 = arith.constant 0 : index
    %c0_26 = arith.constant 0 : index
    %48 = vector.load %arg15[%c0_25, %c0_26] : memref<8x1xf32, #tpu.memory_space<vmem>>, vector<8x1xf32>
    tpu.vector_store %arg15[%c0_25, %c0_26], %27 {strides = array<i32>} : memref<8x1xf32, #tpu.memory_space<vmem>>, vector<8x1xf32>,
    %c0_i32_27 = arith.constant 0 : i32
    %49 = arith.cmpi eq, %arg2, %c0_i32_27 : i32
    %50 = arith.extui %49 : i1 to i32
    %c0_i32_28 = arith.constant 0 : i32
    %51 = arith.cmpi ne, %50, %c0_i32_28 : i32
    scf.if %51 {
      %c0_29 = arith.constant 0 : index
      %c0_30 = arith.constant 0 : index
      %52 = vector.load %arg17[%c0_29, %c0_30] : memref<8x32xf32, #tpu.memory_space<vmem>>, vector<8x32xf32>
      %c0_31 = arith.constant 0 : index
      %c0_32 = arith.constant 0 : index
      %53 = vector.load %arg16[%c0_31, %c0_32] : memref<8x1xf32, #tpu.memory_space<vmem>>, vector<8x1xf32>
      %54 = vector.broadcast %53 : vector<8x1xf32> to vector<8x32xf32>
      %55 = arith.divf %52, %54 : vector<8x32xf32>
      %c0_33 = arith.constant 0 : index
      %c0_34 = arith.constant 0 : index
      %56 = vector.load %arg13[%c0_33, %c0_34] : memref<8x32xf32, #tpu.memory_space<vmem>>, vector<8x32xf32>
      %57 = arith.addf %56, %55 : vector<8x32xf32>
      %c0_35 = arith.constant 0 : index
      %c0_36 = arith.constant 0 : index
      %58 = vector.load %arg13[%c0_35, %c0_36] : memref<8x32xf32, #tpu.memory_space<vmem>>, vector<8x32xf32>
      tpu.vector_store %arg13[%c0_35, %c0_36], %57 {strides = array<i32>} : memref<8x32xf32, #tpu.memory_space<vmem>>, vector<8x32xf32>,
      %c1_i32 = arith.constant 1 : i32
      %59 = arith.cmpi eq, %arg1, %c1_i32 : i32
      %60 = arith.extui %59 : i1 to i32
      %c0_i32_37 = arith.constant 0 : i32
      %61 = arith.cmpi ne, %60, %c0_i32_37 : i32
      scf.if %61 {
        %c0_38 = arith.constant 0 : index
        %c0_39 = arith.constant 0 : index
        %62 = vector.load %arg13[%c0_38, %c0_39] : memref<8x32xf32, #tpu.memory_space<vmem>>, vector<8x32xf32>
        %c0_40 = arith.constant 0 : index
        %c0_41 = arith.constant 0 : index
        %63 = vector.load %arg10[%c0_40, %c0_41] : memref<32x128xf32, #tpu.memory_space<vmem>>, vector<32x128xf32>
        %cst_42 = arith.constant dense<0.000000e+00> : vector<8x128xf32>
        %64 = tpu.matmul %62, %63, %cst_42 {dimension_numbers = #tpu.dot_dimension_numbers<[1], [0], [0], [1], [0, 0, 1, 1], [], []>} : vector<8x32xf32>, vector<32x128xf32>, vector<8x128xf32> -> vector<8x128xf32>
        %c0_43 = arith.constant 0 : index
        %c0_44 = arith.constant 0 : index
        %65 = vector.load %arg11[%c0_43, %c0_44] : memref<1x128xf32, #tpu.memory_space<vmem>>, vector<1x128xf32>
        %66 = vector.broadcast %65 : vector<1x128xf32> to vector<8x128xf32>
        %67 = arith.addf %64, %66 : vector<8x128xf32>
        %c0_45 = arith.constant 0 : index
        %c0_46 = arith.constant 0 : index
        %68 = vector.load %arg12[%c0_45, %c0_46] : memref<8x128xf32, #tpu.memory_space<vmem>>, vector<8x128xf32>
        tpu.vector_store %arg12[%c0_45, %c0_46], %67 {strides = array<i32>} : memref<8x128xf32, #tpu.memory_space<vmem>>, vector<8x128xf32>,
      } else {
      }
    } else {
    }
    return
  }
  func.func @transform_0(%arg0: i32, %arg1: i32, %arg2: i32) -> (i32, i32) {
    %c0_i32 = arith.constant 0 : i32
    %c0_i32_0 = arith.constant 0 : i32
    return %arg0, %c0_i32 : i32, i32
  }
  func.func @transform_1(%arg0: i32, %arg1: i32, %arg2: i32) -> (i32, i32, i32) {
    %c0_i32 = arith.constant 0 : i32
    %c0_i32_0 = arith.constant 0 : i32
    return %arg0, %arg2, %c0_i32 : i32, i32, i32
  }
  func.func @transform_2(%arg0: i32, %arg1: i32, %arg2: i32) -> (i32, i32, i32) {
    %c0_i32 = arith.constant 0 : i32
    %c0_i32_0 = arith.constant 0 : i32
    %c0_i32_1 = arith.constant 0 : i32
    return %arg1, %c0_i32, %c0_i32_0 : i32, i32, i32
  }
  func.func @transform_3(%arg0: i32, %arg1: i32, %arg2: i32) -> (i32, i32, i32) {
    %c0_i32 = arith.constant 0 : i32
    %c0_i32_0 = arith.constant 0 : i32
    %c0_i32_1 = arith.constant 0 : i32
    return %arg1, %c0_i32, %c0_i32_0 : i32, i32, i32
  }
  func.func @transform_4(%arg0: i32, %arg1: i32, %arg2: i32) -> (i32, i32, i32) {
    %c0_i32 = arith.constant 0 : i32
    %c0_i32_0 = arith.constant 0 : i32
    %c0_i32_1 = arith.constant 0 : i32
    return %arg1, %c0_i32, %c0_i32_0 : i32, i32, i32
  }
  func.func @transform_5(%arg0: i32, %arg1: i32, %arg2: i32) -> (i32, i32, i32) {
    %c0_i32 = arith.constant 0 : i32
    %c0_i32_0 = arith.constant 0 : i32
    %c0_i32_1 = arith.constant 0 : i32
    return %arg1, %c0_i32, %c0_i32_0 : i32, i32, i32
  }
  func.func @transform_6(%arg0: i32, %arg1: i32, %arg2: i32) -> i32 {
    %c0_i32 = arith.constant 0 : i32
    %c0_i32_0 = arith.constant 0 : i32
    return %c0_i32 : i32
  }
  func.func @transform_7(%arg0: i32, %arg1: i32, %arg2: i32) -> (i32, i32) {
    %c0_i32 = arith.constant 0 : i32
    %c0_i32_0 = arith.constant 0 : i32
    %c0_i32_1 = arith.constant 0 : i32
    return %c0_i32, %c0_i32_0 : i32, i32
  }
  func.func @transform_8(%arg0: i32, %arg1: i32, %arg2: i32) -> (i32, i32) {
    %c0_i32 = arith.constant 0 : i32
    %c0_i32_0 = arith.constant 0 : i32
    %c0_i32_1 = arith.constant 0 : i32
    return %c0_i32, %c0_i32_0 : i32, i32
  }
  func.func @transform_9(%arg0: i32, %arg1: i32, %arg2: i32) -> (i32, i32) {
    %c0_i32 = arith.constant 0 : i32
    %c0_i32_0 = arith.constant 0 : i32
    return %arg0, %c0_i32 : i32, i32
  }
}

</mosaic_0001>

<llo_original>
// kernel: tpu_custom_call.1
$region0: #{tpu_custom_call.1}
  #allocation0 [shape = 'u32[]', space=smem, size = 0x4, offset = 0x4, fixed_abs, tag = 'smem constant byte address 0x4 - core index']
  #allocation1 [shape = 'u32[72,128]{1,0:T(1,128)}', space=vmem, size = 0x9000, scoped, tag = 'internal scratch']
  #allocation2 [shape = 'f32[8,32]{1,0:T(8,128)}', space=vmem, size = 0x1000, scoped, tag = 'scratch operand']
  #allocation3 [shape = 'f32[8,128]{1,0:T(8,128)}', space=vmem, size = 0x1000, scoped, tag = 'scratch operand']
  #allocation4 [shape = 'f32[8,1]{1,0:T(8,128)}', space=vmem, size = 0x1000, scoped, tag = 'scratch operand']
  #allocation5 [shape = 'f32[8,1]{1,0:T(8,128)}', space=vmem, size = 0x1000, scoped, tag = 'scratch operand']
  #allocation6 [shape = 'f32[8,32]{1,0:T(8,128)}', space=vmem, size = 0x1000, scoped, tag = 'scratch operand']
  %s0 = inlined_call_operand.hbm [shape: f32[8,32], index: 0, kind: input, shape index: {}]
  %s1 = inlined_call_operand.hbm [shape: f32[8,8,32], index: 1, kind: input, shape index: {}]
  %s2 = inlined_call_operand.hbm [shape: f32[2,32,128], index: 2, kind: input, shape index: {}]
  %s3 = inlined_call_operand.vmem [shape: f32[2,1,128], index: 3, kind: input, shape index: {}]
  %s4 = inlined_call_operand.hbm [shape: f32[2,32,128], index: 4, kind: input, shape index: {}]
  %s5 = inlined_call_operand.vmem [shape: f32[2,1,128], index: 5, kind: input, shape index: {}]
  %s6 = inlined_call_operand.vmem [shape: f32[2], index: 6, kind: input, shape index: {}]
  %s7 = inlined_call_operand.hbm [shape: f32[32,128], index: 7, kind: input, shape index: {}]
  %s8 = inlined_call_operand.vmem [shape: f32[1,128], index: 8, kind: input, shape index: {}]
  %s9 = inlined_call_operand.hbm [shape: f32[8,128], index: 9, kind: output, shape index: {}]
  %s10 = sld [smem:[#allocation0]]
  $region109: #{tpu_custom_call.1} parent=0
    _
  %s12 = ssub.s32 1, %s10
  %s13 = scalar_select 0, %s12, %s10
  $region1: #{tpu_custom_call.1} parent=0
    #allocation7 [shape = 'u8[4096]{0}', space=vmem, size = 0x1000, scoped, tag = 'input window, operand 0, single buffered']
    #allocation8 [shape = 's32[2]{0}', space=sflag, size = 0x8, scoped, tag = 'scoped memory for tpu_custom_call.1']
    #allocation9 [shape = 's32[2]{0}', space=sflag, size = 0x8, scoped, tag = 'scoped memory for tpu_custom_call.1']
    #allocation10 [shape = 's32[2]{0}', space=sflag, size = 0x8, scoped, tag = 'scoped memory for tpu_custom_call.1']
    #allocation11 [shape = 'u8[32768]{0}', space=vmem, size = 0x8000, scoped, tag = 'input window, operand 1, single buffered']
    #allocation12 [shape = 's32[1]{0}', space=sflag, size = 0x4, scoped, tag = 'scoped memory for tpu_custom_call.1']
    #allocation13 [shape = 'u8[32768]{0}', space=vmem, size = 0x8000, scoped, tag = 'input window, operand 2']
    #allocation14 [shape = 'u8[32768]{0}', space=vmem, size = 0x8000, scoped, tag = 'input window, operand 4']
    #allocation15 [shape = 'u8[512]{0}', space=smem, size = 0x200, scoped, tag = 'input window, operand 6, single buffered']
    #allocation16 [shape = 'u8[16384]{0}', space=vmem, size = 0x4000, scoped, tag = 'input window, operand 7, single buffered']
    #allocation17 [shape = 'u8[4096]{0}', space=vmem, size = 0x1000, scoped, tag = 'output window, operand 0, single buffered']
    %14 = vsyncpa [#allocation8], 0
    %15 = vsyncpa [#allocation12], 0
    %16 = vsyncpa [#allocation10], 0
    %17 = vsyncpa [#allocation9], 0
    loop: start=0, step=1, limit=4
    $region2: #{tpu_custom_call.1} parent=1 // loop_pre_header
      _
    $region3: #{tpu_custom_call.1} parent=1 // loop_header
      %s19 = sphi 0, %s23
      %p20 = scmp.ge.s32.totalorder %s19, 4
      %s26 = sphi 0, %s45
      %s27 = sphi 0, %s41
      %s28 = sphi 0, %s37
      %s29 = sphi 0, %s26
      %s30 = sphi 0, %s27
      %s31 = sphi 0, %s28
      %s32 = sphi 0, %s29
      %s33 = sphi 0, %s30
      %s34 = sphi 0, %s31
      %s48 = sphi 0, %s50
      %s51 = sphi 0, %s48
      %s52 = sphi 0, %s51
      %s68 = sphi 0, %s52
      %s76 = sphi 0, %s78
      %s79 = sphi 0, %s76
      %s80 = sphi 0, %s79
      %s96 = sphi 0, %s80
      %s102 = sphi 0, %s104
      %s105 = sphi 0, %s102
      %s106 = sphi 0, %s105
      %s122 = sphi 0, %s106
      %s128 = sphi 0, %s130
      %s131 = sphi 0, %s128
      %s132 = sphi 0, %s131
      %s148 = sphi 0, %s132
      %s154 = sphi 0, %s156
      %s157 = sphi 0, %s154
      %s158 = sphi 0, %s157
      %s174 = sphi 0, %s158
      %s180 = sphi 0, %s182
      %s183 = sphi 0, %s180
      %s184 = sphi 0, %s183
      %s200 = sphi 0, %s184
      %s204 = sphi 0, %s204
      %s206 = sphi 0, %s204
      %s207 = sphi 0, %s206
      %s221 = sphi 0, %s207
      %s225 = sphi 0, %s225
      %s227 = sphi 0, %s225
      %s228 = sphi 0, %s227
      %s242 = sphi 0, %s228
      %s246 = sphi 0, %s246
      %s248 = sphi 0, %s246
      %s249 = sphi 0, %s248
      %s263 = sphi 0, %s249
      %s269 = sphi 0, %s271
      %s272 = sphi 0, %s269
      %s273 = sphi 0, %s272
      %s289 = sphi 0, %s273
    $region4: #{tpu_custom_call.1} parent=1 // loop_header_branch
      %22 = sbr.rel (%p20) target = $region8
    $region5: #{tpu_custom_call.1} parent=1 // loop_body
      %s24 = ssub.s32 %s19, 1
      %s25 = ssub.s32 %s19, 2
      %s35 = sadd.s32 1, %s28
      %p36 = scmp.ge.s32.totalorder %s35, 1
      %s37 = scalar_select %p36, 0, %s35
      %s38 = sadd.s32 1, %s27
      %s39 = scalar_select %p36, %s38, %s27
      %p40 = scmp.ge.s32.totalorder %s39, 2
      %s41 = scalar_select %p40, 0, %s39
      %s42 = sadd.s32 1, %s26
      %s43 = scalar_select %p40, %s42, %s26
      %p44 = scmp.ge.s32.totalorder %s43, 1
      %s45 = scalar_select %p44, 0, %s43
      %s46 = ssub.s32 %s26, %s45
      %p47 = scmp.eq.s32.totalorder %s46, 0
      %s49 = sadd.s32 %s48, 1
      %s50 = scalar_select %p47, %s48, %s49
      %p53 = pneg %p47
      %p54 = scmp.eq.s32.totalorder %s19, 1
      %p55 = por %p53, %p54
      %p56 = scmp.ne.s32.totalorder %s48, %s51
      %p57 = scmp.eq.s32.totalorder %s19, 0
      %p58 = por %p56, %p57
      %p59 = scmp.ne.s32.totalorder %s48, %s51
      %p60 = scmp.eq.s32.totalorder %s24, 1
      %p61 = por %p59, %p60
      %p62 = scmp.ne.s32.totalorder %s51, %s52
      %p63 = scmp.eq.s32.totalorder %s24, 0
      %p64 = por %p62, %p63
      %p65 = scmp.ne.s32.totalorder %s51, %s52
      %p66 = scmp.eq.s32.totalorder %s25, 1
      %p67 = por %p65, %p66
      %p69 = scmp.ne.s32.totalorder %s52, %s68
      %p70 = scmp.eq.s32.totalorder %s25, 0
      %p71 = por %p69, %p70
      %s72 = ssub.s32 %s26, %s45
      %s73 = ssub.s32 %s28, %s37
      %s74 = sor.u32 %s72, %s73
      %p75 = scmp.eq.s32.totalorder %s74, 0
      %s77 = sadd.s32 %s76, 1
      %s78 = scalar_select %p75, %s76, %s77
      %p81 = pneg %p75
      %p82 = scmp.eq.s32.totalorder %s19, 1
      %p83 = por %p81, %p82
      %p84 = scmp.ne.s32.totalorder %s76, %s79
      %p85 = scmp.eq.s32.totalorder %s19, 0
      %p86 = por %p84, %p85
      %p87 = scmp.ne.s32.totalorder %s76, %s79
      %p88 = scmp.eq.s32.totalorder %s24, 1
      %p89 = por %p87, %p88
      %p90 = scmp.ne.s32.totalorder %s79, %s80
      %p91 = scmp.eq.s32.totalorder %s24, 0
      %p92 = por %p90, %p91
      %p93 = scmp.ne.s32.totalorder %s79, %s80
      %p94 = scmp.eq.s32.totalorder %s25, 1
      %p95 = por %p93, %p94
      %p97 = scmp.ne.s32.totalorder %s80, %s96
      %p98 = scmp.eq.s32.totalorder %s25, 0
      %p99 = por %p97, %p98
      %s100 = ssub.s32 %s27, %s41
      %p101 = scmp.eq.s32.totalorder %s100, 0
      %s103 = sadd.s32 %s102, 1
      %s104 = scalar_select %p101, %s102, %s103
      %p107 = pneg %p101
      %p108 = scmp.eq.s32.totalorder %s19, 1
      %p109 = por %p107, %p108
      %p110 = scmp.ne.s32.totalorder %s102, %s105
      %p111 = scmp.eq.s32.totalorder %s19, 0
      %p112 = por %p110, %p111
      %p113 = scmp.ne.s32.totalorder %s102, %s105
      %p114 = scmp.eq.s32.totalorder %s24, 1
      %p115 = por %p113, %p114
      %p116 = scmp.ne.s32.totalorder %s105, %s106
      %p117 = scmp.eq.s32.totalorder %s24, 0
      %p118 = por %p116, %p117
      %p119 = scmp.ne.s32.totalorder %s105, %s106
      %p120 = scmp.eq.s32.totalorder %s25, 1
      %p121 = por %p119, %p120
      %p123 = scmp.ne.s32.totalorder %s106, %s122
      %p124 = scmp.eq.s32.totalorder %s25, 0
      %p125 = por %p123, %p124
      %s126 = ssub.s32 %s27, %s41
      %p127 = scmp.eq.s32.totalorder %s126, 0
      %s129 = sadd.s32 %s128, 1
      %s130 = scalar_select %p127, %s128, %s129
      %p133 = pneg %p127
      %p134 = scmp.eq.s32.totalorder %s19, 1
      %p135 = por %p133, %p134
      %p136 = scmp.ne.s32.totalorder %s128, %s131
      %p137 = scmp.eq.s32.totalorder %s19, 0
      %p138 = por %p136, %p137
      %p139 = scmp.ne.s32.totalorder %s128, %s131
      %p140 = scmp.eq.s32.totalorder %s24, 1
      %p141 = por %p139, %p140
      %p142 = scmp.ne.s32.totalorder %s131, %s132
      %p143 = scmp.eq.s32.totalorder %s24, 0
      %p144 = por %p142, %p143
      %p145 = scmp.ne.s32.totalorder %s131, %s132
      %p146 = scmp.eq.s32.totalorder %s25, 1
      %p147 = por %p145, %p146
      %p149 = scmp.ne.s32.totalorder %s132, %s148
      %p150 = scmp.eq.s32.totalorder %s25, 0
      %p151 = por %p149, %p150
      %s152 = ssub.s32 %s27, %s41
      %p153 = scmp.eq.s32.totalorder %s152, 0
      %s155 = sadd.s32 %s154, 1
      %s156 = scalar_select %p153, %s154, %s155
      %p159 = pneg %p153
      %p160 = scmp.eq.s32.totalorder %s19, 1
      %p161 = por %p159, %p160
      %p162 = scmp.ne.s32.totalorder %s154, %s157
      %p163 = scmp.eq.s32.totalorder %s19, 0
      %p164 = por %p162, %p163
      %p165 = scmp.ne.s32.totalorder %s154, %s157
      %p166 = scmp.eq.s32.totalorder %s24, 1
      %p167 = por %p165, %p166
      %p168 = scmp.ne.s32.totalorder %s157, %s158
      %p169 = scmp.eq.s32.totalorder %s24, 0
      %p170 = por %p168, %p169
      %p171 = scmp.ne.s32.totalorder %s157, %s158
      %p172 = scmp.eq.s32.totalorder %s25, 1
      %p173 = por %p171, %p172
      %p175 = scmp.ne.s32.totalorder %s158, %s174
      %p176 = scmp.eq.s32.totalorder %s25, 0
      %p177 = por %p175, %p176
      %s178 = ssub.s32 %s27, %s41
      %p179 = scmp.eq.s32.totalorder %s178, 0
      %s181 = sadd.s32 %s180, 1
      %s182 = scalar_select %p179, %s180, %s181
      %p185 = pneg %p179
      %p186 = scmp.eq.s32.totalorder %s19, 1
      %p187 = por %p185, %p186
      %p188 = scmp.ne.s32.totalorder %s180, %s183
      %p189 = scmp.eq.s32.totalorder %s19, 0
      %p190 = por %p188, %p189
      %p191 = scmp.ne.s32.totalorder %s180, %s183
      %p192 = scmp.eq.s32.totalorder %s24, 1
      %p193 = por %p191, %p192
      %p194 = scmp.ne.s32.totalorder %s183, %s184
      %p195 = scmp.eq.s32.totalorder %s24, 0
      %p196 = por %p194, %p195
      %p197 = scmp.ne.s32.totalorder %s183, %s184
      %p198 = scmp.eq.s32.totalorder %s25, 1
      %p199 = por %p197, %p198
      %p201 = scmp.ne.s32.totalorder %s184, %s200
      %p202 = scmp.eq.s32.totalorder %s25, 0
      %p203 = por %p201, %p202
      %s205 = sadd.s32 %s204, 1
      %p208 = scmp.eq.s32.totalorder %s19, 1
      %p209 = scmp.ne.s32.totalorder %s204, %s206
      %p210 = scmp.eq.s32.totalorder %s19, 0
      %p211 = por %p209, %p210
      %p212 = scmp.ne.s32.totalorder %s204, %s206
      %p213 = scmp.eq.s32.totalorder %s24, 1
      %p214 = por %p212, %p213
      %p215 = scmp.ne.s32.totalorder %s206, %s207
      %p216 = scmp.eq.s32.totalorder %s24, 0
      %p217 = por %p215, %p216
      %p218 = scmp.ne.s32.totalorder %s206, %s207
      %p219 = scmp.eq.s32.totalorder %s25, 1
      %p220 = por %p218, %p219
      %p222 = scmp.ne.s32.totalorder %s207, %s221
      %p223 = scmp.eq.s32.totalorder %s25, 0
      %p224 = por %p222, %p223
      %s226 = sadd.s32 %s225, 1
      %p229 = scmp.eq.s32.totalorder %s19, 1
      %p230 = scmp.ne.s32.totalorder %s225, %s227
      %p231 = scmp.eq.s32.totalorder %s19, 0
      %p232 = por %p230, %p231
      %p233 = scmp.ne.s32.totalorder %s225, %s227
      %p234 = scmp.eq.s32.totalorder %s24, 1
      %p235 = por %p233, %p234
      %p236 = scmp.ne.s32.totalorder %s227, %s228
      %p237 = scmp.eq.s32.totalorder %s24, 0
      %p238 = por %p236, %p237
      %p239 = scmp.ne.s32.totalorder %s227, %s228
      %p240 = scmp.eq.s32.totalorder %s25, 1
      %p241 = por %p239, %p240
      %p243 = scmp.ne.s32.totalorder %s228, %s242
      %p244 = scmp.eq.s32.totalorder %s25, 0
      %p245 = por %p243, %p244
      %s247 = sadd.s32 %s246, 1
      %p250 = scmp.eq.s32.totalorder %s19, 1
      %p251 = scmp.ne.s32.totalorder %s246, %s248
      %p252 = scmp.eq.s32.totalorder %s19, 0
      %p253 = por %p251, %p252
      %p254 = scmp.ne.s32.totalorder %s246, %s248
      %p255 = scmp.eq.s32.totalorder %s24, 1
      %p256 = por %p254, %p255
      %p257 = scmp.ne.s32.totalorder %s248, %s249
      %p258 = scmp.eq.s32.totalorder %s24, 0
      %p259 = por %p257, %p258
      %p260 = scmp.ne.s32.totalorder %s248, %s249
      %p261 = scmp.eq.s32.totalorder %s25, 1
      %p262 = por %p260, %p261
      %p264 = scmp.ne.s32.totalorder %s249, %s263
      %p265 = scmp.eq.s32.totalorder %s25, 0
      %p266 = por %p264, %p265
      %s267 = ssub.s32 %s26, %s45
      %p268 = scmp.eq.s32.totalorder %s267, 0
      %s270 = sadd.s32 %s269, 1
      %s271 = scalar_select %p268, %s269, %s270
      %p274 = pneg %p268
      %p275 = scmp.eq.s32.totalorder %s19, 1
      %p276 = por %p274, %p275
      %p277 = scmp.ne.s32.totalorder %s269, %s272
      %p278 = scmp.eq.s32.totalorder %s19, 0
      %p279 = por %p277, %p278
      %p280 = scmp.ne.s32.totalorder %s269, %s272
      %p281 = scmp.eq.s32.totalorder %s24, 1
      %p282 = por %p280, %p281
      %p283 = scmp.ne.s32.totalorder %s272, %s273
      %p284 = scmp.eq.s32.totalorder %s24, 0
      %p285 = por %p283, %p284
      %p286 = scmp.ne.s32.totalorder %s272, %s273
      %p287 = scmp.eq.s32.totalorder %s25, 1
      %p288 = por %p286, %p287
      %p290 = scmp.ne.s32.totalorder %s273, %s289
      %p291 = scmp.eq.s32.totalorder %s25, 0
      %p292 = por %p290, %p291
      %p293 = scmp.le.s32.totalorder 1, %s19
      %p294 = scmp.lt.s32.totalorder %s19, 3
      %p295 = pnand %p293, %p294
      %p296 = pneg %p295
      // Predicated region
      $region9: #{tpu_custom_call.1} parent=5 // pred_check
        _
      $region10: #{tpu_custom_call.1} parent=5 // pred_check_branch
        %298 = sbr.rel (%p295) target = $region12
      $region11: #{tpu_custom_call.1} parent=5 // pred_region
        %s299 = ssub.s32 %s19, 1
        // Predicated region
        $region13: #{tpu_custom_call.1} parent=11 // pred_check
          %p300 = pneg %p64
        $region14: #{tpu_custom_call.1} parent=11 // pred_check_branch
          %302 = sbr.rel (%p300) target = $region16
        $region15: #{tpu_custom_call.1} parent=11 // pred_region
          %304 = vsyncadd [#allocation8], 0
          %s305 = smul.addr %s29, 8
          %s306 = scalar_lea.hbm %s0, %s305
          %s308 = sshll.u32 %s306, 4
          %s309 = int_to_ptr.hbm [resolvable:$true] %s308
          %s310 = sshll.u32 [#allocation7], 4
          %s311 = int_to_ptr.vmem [resolvable:$true] %s310
          %313 = dma.hbm_to_vmem [thread:$0]  %s309, 128, %s311, [#allocation8]
        $region16: #{tpu_custom_call.1} parent=11 // pred_fallthru
          _
        // Predicated region
        $region17: #{tpu_custom_call.1} parent=11 // pred_check
          %p314 = pneg %p92
        $region18: #{tpu_custom_call.1} parent=11 // pred_check_branch
          %316 = sbr.rel (%p314) target = $region20
        $region19: #{tpu_custom_call.1} parent=11 // pred_region
          %s317 = smul.u32 8, %s29
          %319 = vsyncadd [#allocation12], 0
          %s320 = sadd.s32 %s31, %s317
          %s321 = smul.addr %s320, 8
          %s322 = scalar_lea.hbm %s1, %s321
          %s323 = sshll.u32 %s322, 4
          %s324 = int_to_ptr.hbm [resolvable:$true] %s323
          %s325 = sshll.u32 [#allocation11], 4
          %s326 = int_to_ptr.vmem [resolvable:$true] %s325
          %331 = dma.hbm_to_vmem [thread:$0]  %s324, 1024, %s326, [#allocation12], 128, 128, 8
        $region20: #{tpu_custom_call.1} parent=11 // pred_fallthru
          _
        // Predicated region
        $region21: #{tpu_custom_call.1} parent=11 // pred_check
          %p332 = pneg %p217
        $region22: #{tpu_custom_call.1} parent=11 // pred_check_branch
          %334 = sbr.rel (%p332) target = $region24
        $region23: #{tpu_custom_call.1} parent=11 // pred_region
          %336 = vsyncadd [#allocation10], 0
          %s338 = sshll.u32 %s6, 4
          %s339 = int_to_ptr.vmem [resolvable:$true] %s338
          %341 = dma.vmem_to_smem %s339, 16, [#allocation15], [#allocation10]
        $region24: #{tpu_custom_call.1} parent=11 // pred_fallthru
          _
        // Predicated region
        $region25: #{tpu_custom_call.1} parent=11 // pred_check
          %p342 = pneg %p238
        $region26: #{tpu_custom_call.1} parent=11 // pred_check_branch
          %344 = sbr.rel (%p342) target = $region28
        $region27: #{tpu_custom_call.1} parent=11 // pred_region
          %346 = vsyncadd [#allocation12], 0
          %s347 = sshll.u32 %s7, 4
          %s348 = int_to_ptr.hbm [resolvable:$true] %s347
          %s349 = sshll.u32 [#allocation16], 4
          %s350 = int_to_ptr.vmem [resolvable:$true] %s349
          %355 = dma.hbm_to_vmem [thread:$0]  %s348, 512, %s350, [#allocation12], 128, 128, 8
        $region28: #{tpu_custom_call.1} parent=11 // pred_fallthru
          _
        // Predicated region
        $region29: #{tpu_custom_call.1} parent=11 // pred_check
          %p356 = pneg %p259
        $region30: #{tpu_custom_call.1} parent=11 // pred_check_branch
          %358 = sbr.rel (%p356) target = $region32
        $region31: #{tpu_custom_call.1} parent=11 // pred_region
          _
        $region32: #{tpu_custom_call.1} parent=11 // pred_fallthru
          _
      $region12: #{tpu_custom_call.1} parent=5 // pred_fallthru
        _
      %p359 = scmp.lt.s32.totalorder %s19, 2
      // Predicated region
      $region33: #{tpu_custom_call.1} parent=5 // pred_check
        %p360 = pneg %p359
      $region34: #{tpu_custom_call.1} parent=5 // pred_check_branch
        %362 = sbr.rel (%p360) target = $region36
      $region35: #{tpu_custom_call.1} parent=5 // pred_region
        // Predicated region
        $region37: #{tpu_custom_call.1} parent=35 // pred_check
          %p363 = pneg %p112
        $region38: #{tpu_custom_call.1} parent=35 // pred_check_branch
          %365 = sbr.rel (%p363) target = $region40
        $region39: #{tpu_custom_call.1} parent=35 // pred_region
          %s366 = sand.u32 %s19, 1
          %s367 = scalar_lea.sflag [#allocation8], %s366
          %s368 = sand.u32 %s102, 1
          %s369 = smul.addr %s368, 32
          %s370 = scalar_lea.vmem [#allocation13], %s369
          %372 = vsyncadd %s367, 0
          %s373 = smul.addr %s27, 4
          %s374 = smul.addr %s373, 8
          %s375 = scalar_lea.hbm %s2, %s374
          %s376 = sshll.u32 %s375, 4
          %s377 = int_to_ptr.hbm [resolvable:$true] %s376
          %s378 = sshll.u32 %s370, 4
          %s379 = int_to_ptr.vmem [resolvable:$true] %s378
          %384 = dma.hbm_to_vmem [thread:$0]  %s377, 512, %s379, %s367, 128, 128, 8
        $region40: #{tpu_custom_call.1} parent=35 // pred_fallthru
          _
        // Predicated region
        $region41: #{tpu_custom_call.1} parent=35 // pred_check
          %p385 = pneg %p138
        $region42: #{tpu_custom_call.1} parent=35 // pred_check_branch
          %387 = sbr.rel (%p385) target = $region44
        $region43: #{tpu_custom_call.1} parent=35 // pred_region
          %p388 = scmp.lt.s32.totalorder %s27, 1
          %s389 = scalar_select %p388, %s27, 1
          %s390 = scalar_lea.vmem %s3, %s389
        $region44: #{tpu_custom_call.1} parent=35 // pred_fallthru
          _
        // Predicated region
        $region45: #{tpu_custom_call.1} parent=35 // pred_check
          %p391 = pneg %p164
        $region46: #{tpu_custom_call.1} parent=35 // pred_check_branch
          %393 = sbr.rel (%p391) target = $region48
        $region47: #{tpu_custom_call.1} parent=35 // pred_region
          %s394 = sand.u32 %s19, 1
          %s395 = scalar_lea.sflag [#allocation8], %s394
          %s396 = sand.u32 %s154, 1
          %s397 = smul.addr %s396, 32
          %s398 = scalar_lea.vmem [#allocation14], %s397
          %400 = vsyncadd %s395, 0
          %s401 = smul.addr %s27, 4
          %s402 = smul.addr %s401, 8
          %s403 = scalar_lea.hbm %s4, %s402
          %s404 = sshll.u32 %s403, 4
          %s405 = int_to_ptr.hbm [resolvable:$true] %s404
          %s406 = sshll.u32 %s398, 4
          %s407 = int_to_ptr.vmem [resolvable:$true] %s406
          %412 = dma.hbm_to_vmem [thread:$0]  %s405, 512, %s407, %s395, 128, 128, 8
        $region48: #{tpu_custom_call.1} parent=35 // pred_fallthru
          _
        // Predicated region
        $region49: #{tpu_custom_call.1} parent=35 // pred_check
          %p413 = pneg %p190
        $region50: #{tpu_custom_call.1} parent=35 // pred_check_branch
          %415 = sbr.rel (%p413) target = $region52
        $region51: #{tpu_custom_call.1} parent=35 // pred_region
          %p416 = scmp.lt.s32.totalorder %s27, 1
          %s417 = scalar_select %p416, %s27, 1
          %s418 = scalar_lea.vmem %s5, %s417
        $region52: #{tpu_custom_call.1} parent=35 // pred_fallthru
          _
      $region36: #{tpu_custom_call.1} parent=5 // pred_fallthru
        _
      %p419 = scmp.le.s32.totalorder 1, %s19
      %p420 = scmp.lt.s32.totalorder %s19, 3
      %p421 = pnand %p419, %p420
      %p422 = pneg %p421
      // Predicated region
      $region53: #{tpu_custom_call.1} parent=5 // pred_check
        _
      $region54: #{tpu_custom_call.1} parent=5 // pred_check_branch
        %424 = sbr.rel (%p421) target = $region56
      $region55: #{tpu_custom_call.1} parent=5 // pred_region
        %s425 = ssub.s32 %s19, 1
        // Predicated region
        $region57: #{tpu_custom_call.1} parent=55 // pred_check
          %p426 = pneg %p64
        $region58: #{tpu_custom_call.1} parent=55 // pred_check_branch
          %428 = sbr.rel (%p426) target = $region60
        $region59: #{tpu_custom_call.1} parent=55 // pred_region
          %430 = dma.done [#allocation8], 128
        $region60: #{tpu_custom_call.1} parent=55 // pred_fallthru
          _
        // Predicated region
        $region61: #{tpu_custom_call.1} parent=55 // pred_check
          %p431 = pneg %p92
        $region62: #{tpu_custom_call.1} parent=55 // pred_check_branch
          %433 = sbr.rel (%p431) target = $region64
        $region63: #{tpu_custom_call.1} parent=55 // pred_region
          %435 = dma.done [#allocation12], 1024
        $region64: #{tpu_custom_call.1} parent=55 // pred_fallthru
          _
        %s436 = sand.u32 %s24, 1
        %s437 = scalar_lea.sflag [#allocation8], %s436
        %s438 = sand.u32 %s105, 1
        %s439 = smul.addr %s438, 32
        %s440 = scalar_lea.vmem [#allocation13], %s439
        // Predicated region
        $region65: #{tpu_custom_call.1} parent=55 // pred_check
          %p441 = pneg %p118
        $region66: #{tpu_custom_call.1} parent=55 // pred_check_branch
          %443 = sbr.rel (%p441) target = $region68
        $region67: #{tpu_custom_call.1} parent=55 // pred_region
          %445 = dma.done %s437, 512
        $region68: #{tpu_custom_call.1} parent=55 // pred_fallthru
          _
        %s446 = sand.u32 %s24, 1
        %s447 = scalar_lea.sflag [#allocation8], %s446
        %s448 = sand.u32 %s157, 1
        %s449 = smul.addr %s448, 32
        %s450 = scalar_lea.vmem [#allocation14], %s449
        // Predicated region
        $region69: #{tpu_custom_call.1} parent=55 // pred_check
          %p451 = pneg %p170
        $region70: #{tpu_custom_call.1} parent=55 // pred_check_branch
          %453 = sbr.rel (%p451) target = $region72
        $region71: #{tpu_custom_call.1} parent=55 // pred_region
          %455 = dma.done %s447, 512
        $region72: #{tpu_custom_call.1} parent=55 // pred_fallthru
          _
        // Predicated region
        $region73: #{tpu_custom_call.1} parent=55 // pred_check
          %p456 = pneg %p217
        $region74: #{tpu_custom_call.1} parent=55 // pred_check_branch
          %458 = sbr.rel (%p456) target = $region76
        $region75: #{tpu_custom_call.1} parent=55 // pred_region
          %460 = dma.done [#allocation10], 16
        $region76: #{tpu_custom_call.1} parent=55 // pred_fallthru
          _
        // Predicated region
        $region77: #{tpu_custom_call.1} parent=55 // pred_check
          %p461 = pneg %p238
        $region78: #{tpu_custom_call.1} parent=55 // pred_check_branch
          %463 = sbr.rel (%p461) target = $region80
        $region79: #{tpu_custom_call.1} parent=55 // pred_region
          %465 = dma.done [#allocation12], 512
        $region80: #{tpu_custom_call.1} parent=55 // pred_fallthru
          _
        %466 = sfence
        %p467 = pneg %p64
        %p468 = pneg %p61
        %p469 = pneg %p92
        %p470 = pneg %p89
        %s471 = sand.u32 %s24, 1
        %s472 = scalar_lea.sflag [#allocation8], %s471
        %s473 = sand.u32 %s105, 1
        %s474 = smul.addr %s473, 32
        %s475 = scalar_lea.vmem [#allocation13], %s474
        %p476 = pneg %p118
        %p477 = pneg %p115
        %p478 = scmp.lt.s32.totalorder %s30, 1
        %s479 = scalar_select %p478, %s30, 1
        %s480 = scalar_lea.vmem %s3, %s479
        %p481 = pneg %p144
        %p482 = pneg %p141
        %s483 = sand.u32 %s24, 1
        %s484 = scalar_lea.sflag [#allocation8], %s483
        %s485 = sand.u32 %s157, 1
        %s486 = smul.addr %s485, 32
        %s487 = scalar_lea.vmem [#allocation14], %s486
        %p488 = pneg %p170
        %p489 = pneg %p167
        %p490 = scmp.lt.s32.totalorder %s30, 1
        %s491 = scalar_select %p490, %s30, 1
        %s492 = scalar_lea.vmem %s5, %s491
        %p493 = pneg %p196
        %p494 = pneg %p193
        %p495 = pneg %p217
        %p496 = pneg %p214
        %p497 = pneg %p238
        %p498 = pneg %p235
        %p499 = pneg %p259
        %p500 = pneg %p256
        %p501 = pneg %p285
        %p502 = pneg %p282
        %s503 = smul.u32 8, %s29
        %p504 = scmp.lt.s32.totalorder %s30, 1
        %s505 = scalar_select %p504, %s30, 1
        %s506 = scalar_lea.vmem %s3, %s505
        %p507 = scmp.lt.s32.totalorder %s30, 1
        %s508 = scalar_select %p507, %s30, 1
        %s509 = scalar_lea.vmem %s5, %s508
        %p510 = scmp.eq.s32.totalorder %s31, 0
        // Predicated region
        $region81: #{tpu_custom_call.1} parent=55 // pred_check
          %p511 = pneg %p510
        $region82: #{tpu_custom_call.1} parent=55 // pred_check_branch
          %513 = sbr.rel (%p511) target = $region84
        $region83: #{tpu_custom_call.1} parent=55 // pred_region
          %p514 = scmp.eq.s32.totalorder %s30, 0
          // Predicated region
          $region85: #{tpu_custom_call.1} parent=83 // pred_check
            %p515 = pneg %p514
          $region86: #{tpu_custom_call.1} parent=83 // pred_check_branch
            %517 = sbr.rel (%p515) target = $region88
          $region87: #{tpu_custom_call.1} parent=83 // pred_region
            %v518 = vld [vmem:[#allocation7] sm:$0xff]
            %vm519 = vcmask 261120
            %520 = vst.msk [vmem:[#allocation2] sm:$0xff] %vm519, %v518
          $region88: #{tpu_custom_call.1} parent=83 // pred_fallthru
            _
          %v521 = vld [vmem:[#allocation2] sm:$0xff]
          %v522 = vld [vmem:[%s440] sm:$0xff]
          %v523 = vld [vmem:[%s440 + $0x8] sm:$0xff]
          %v524 = vld [vmem:[%s440 + $0x10] sm:$0xff]
          %v525 = vld [vmem:[%s440 + $0x18] sm:$0xff]
          %v526 = vld [vmem:[%s506] sm:$0x1]
          %v528 = vperm.slane %v526, 0
          %vm530 = vcmask 261120
          %v532 = vsel %vm530, %v521, 0
          %534 = vmatpush.msra.mxu0 0.0
          %535 = vmatpush.msra.mxu0 0.0
          %536 = vmatpush.msra.mxu0 0.0
          %537 = vmatpush.msra.mxu0 0.0
          %538 = vmatpush.msra.mxu0 0.0
          %539 = vmatpush.msra.mxu0 0.0
          %540 = vmatpush.msra.mxu0 0.0
          %541 = vmatpush.msra.mxu0 0.0
          %542 = vmatpush.msra.mxu0 0.0
          %543 = vmatpush.msra.mxu0 0.0
          %544 = vmatpush.msra.mxu0 0.0
          %545 = vmatpush.msra.mxu0 0.0
          %546 = vmatpush.msra.mxu0 %v525
          %547 = vmatpush.msra.mxu0 %v524
          %548 = vmatpush.msra.mxu0 %v523
          %549 = vmatpush.msra.mxu0 %v522
          %550 = vmatmul.f32.gmra.mxu0 %v532
          %v551 = vpop.f32.mrf.mxu0
          %v552 = vadd.f32 %v528, %v551
          %553 = vdwg.mxu0
          %554 = vst [vmem:[#allocation3] sm:$0xff] %v552
          %vm555 = vcmask 7168
          %556 = vst.msk [vmem:[#allocation4] sm:$0xff] %vm555, -inf
          %557 = vst.msk [vmem:[#allocation5] sm:$0xff] %vm555, 0.0
          %558 = vst.msk [vmem:[#allocation6] sm:$0xff] %vm530, 0.0
        $region84: #{tpu_custom_call.1} parent=55 // pred_fallthru
          _
        %v559 = vld [vmem:[#allocation11] sm:$0xff]
        %v560 = vld [vmem:[#allocation11 + $0x8] sm:$0xff]
        %v561 = vld [vmem:[#allocation11 + $0x10] sm:$0xff]
        %v562 = vld [vmem:[#allocation11 + $0x18] sm:$0xff]
        %v563 = vld [vmem:[#allocation11 + $0x20] sm:$0xff]
        %v564 = vld [vmem:[#allocation11 + $0x28] sm:$0xff]
        %v565 = vld [vmem:[#allocation11 + $0x30] sm:$0xff]
        %v566 = vld [vmem:[#allocation11 + $0x38] sm:$0xff]
        %v567 = vld [vmem:[%s450] sm:$0xff]
        %v568 = vld [vmem:[%s450 + $0x8] sm:$0xff]
        %v569 = vld [vmem:[%s450 + $0x10] sm:$0xff]
        %v570 = vld [vmem:[%s450 + $0x18] sm:$0xff]
        %vm571 = vcmask 261120
        %v573 = vsel %vm571, %v559, 0
        %v576 = vsel %vm571, %v560, 0
        %v579 = vsel %vm571, %v561, 0
        %v582 = vsel %vm571, %v562, 0
        %v585 = vsel %vm571, %v563, 0
        %v588 = vsel %vm571, %v564, 0
        %v591 = vsel %vm571, %v565, 0
        %v594 = vsel %vm571, %v566, 0
        %596 = vmatpush.msra.mxu0 0.0
        %597 = vmatpush.msra.mxu0 0.0
        %598 = vmatpush.msra.mxu0 0.0
        %599 = vmatpush.msra.mxu0 0.0
        %600 = vmatpush.msra.mxu0 0.0
        %601 = vmatpush.msra.mxu0 0.0
        %602 = vmatpush.msra.mxu0 0.0
        %603 = vmatpush.msra.mxu0 0.0
        %604 = vmatpush.msra.mxu0 0.0
        %605 = vmatpush.msra.mxu0 0.0
        %606 = vmatpush.msra.mxu0 0.0
        %607 = vmatpush.msra.mxu0 0.0
        %608 = vmatpush.msra.mxu0 %v570
        %609 = vmatpush.msra.mxu0 %v569
        %610 = vmatpush.msra.mxu0 %v568
        %611 = vmatpush.msra.mxu0 %v567
        %612 = vmatmul.f32.gmra.mxu0 %v573
        %v613 = vpop.f32.mrf.mxu0
        %v614 = vadd.f32 0.0, %v613
        %615 = vmatmul.f32.gmra.mxu0 %v576
        %v616 = vpop.f32.mrf.mxu0
        %v617 = vadd.f32 0.0, %v616
        %618 = vmatmul.f32.gmra.mxu0 %v579
        %v619 = vpop.f32.mrf.mxu0
        %v620 = vadd.f32 0.0, %v619
        %621 = vmatmul.f32.gmra.mxu0 %v582
        %v622 = vpop.f32.mrf.mxu0
        %v623 = vadd.f32 0.0, %v622
        %624 = vmatmul.f32.gmra.mxu0 %v585
        %v625 = vpop.f32.mrf.mxu0
        %v626 = vadd.f32 0.0, %v625
        %627 = vmatmul.f32.gmra.mxu0 %v588
        %v628 = vpop.f32.mrf.mxu0
        %v629 = vadd.f32 0.0, %v628
        %630 = vmatmul.f32.gmra.mxu0 %v591
        %v631 = vpop.f32.mrf.mxu0
        %v632 = vadd.f32 0.0, %v631
        %633 = vmatmul.f32.gmra.mxu0 %v594
        %v634 = vpop.f32.mrf.mxu0
        %v635 = vadd.f32 0.0, %v634
        %636 = vdwg.mxu0
        %v637 = vld [vmem:[#allocation3] sm:$0xff]
        %v639 = vrot.slane %v637, 1
        %v640 = vrot.slane %v637, 2
        %v641 = vrot.slane %v637, 3
        %v642 = vrot.slane %v637, 4
        %v643 = vrot.slane %v637, 5
        %v644 = vrot.slane %v637, 6
        %v645 = vrot.slane %v637, 7
        %v646 = vperm.slane %v637, 0
        %v647 = vperm.slane %v639, 0
        %v648 = vperm.slane %v640, 0
        %v649 = vperm.slane %v641, 0
        %v650 = vperm.slane %v642, 0
        %v651 = vperm.slane %v643, 0
        %v652 = vperm.slane %v644, 0
        %v653 = vperm.slane %v645, 0
        %v662 = vadd.f32 %v614, %v646
        %v663 = vadd.f32 %v617, %v647
        %v664 = vadd.f32 %v620, %v648
        %v665 = vadd.f32 %v623, %v649
        %v666 = vadd.f32 %v626, %v650
        %v667 = vadd.f32 %v629, %v651
        %v668 = vadd.f32 %v632, %v652
        %v669 = vadd.f32 %v635, %v653
        %v670 = vtanh.pop %v662
        %v671 = vtanh.pop %v663
        %v672 = vtanh.pop %v664
        %v673 = vtanh.pop %v665
        %v674 = vtanh.pop %v666
        %v675 = vtanh.pop %v667
        %v676 = vtanh.pop %v668
        %v677 = vtanh.pop %v669
        %v678 = vld [vmem:[%s509] sm:$0x1]
        %v680 = vperm.slane %v678, 0
        %v682 = vmul.f32 %v670, %v680
        %v683 = vmul.f32 %v671, %v680
        %v684 = vmul.f32 %v672, %v680
        %v685 = vmul.f32 %v673, %v680
        %v686 = vmul.f32 %v674, %v680
        %v687 = vmul.f32 %v675, %v680
        %v688 = vmul.f32 %v676, %v680
        %v689 = vmul.f32 %v677, %v680
        %690 = vadd.xlane.f32.xlu0 %v682
        %v691 = vpop.xlane.xlu0 %690
        %692 = vadd.xlane.f32.xlu0 %v683
        %v693 = vpop.xlane.xlu0 %692
        %694 = vadd.xlane.f32.xlu0 %v684
        %v695 = vpop.xlane.xlu0 %694
        %696 = vadd.xlane.f32.xlu0 %v685
        %v697 = vpop.xlane.xlu0 %696
        %698 = vadd.xlane.f32.xlu0 %v686
        %v699 = vpop.xlane.xlu0 %698
        %700 = vadd.xlane.f32.xlu0 %v687
        %v701 = vpop.xlane.xlu0 %700
        %702 = vadd.xlane.f32.xlu0 %v688
        %v703 = vpop.xlane.xlu0 %702
        %704 = vadd.xlane.f32.xlu0 %v689
        %v705 = vpop.xlane.xlu0 %704
        %s706 = sld [smem:[#allocation15 + %s30]]
        %v707 = vstv %s706
        %v708 = vadd.f32 %v691, %v707
        %v709 = vadd.f32 %v693, %v707
        %v710 = vadd.f32 %v695, %v707
        %v711 = vadd.f32 %v697, %v707
        %v712 = vadd.f32 %v699, %v707
        %v713 = vadd.f32 %v701, %v707
        %v714 = vadd.f32 %v703, %v707
        %v715 = vadd.f32 %v705, %v707
        %v716 = vld [vmem:[#allocation4] sm:$0xff]
        %v725 = vlaneseq
        %v726 = vand.u32 %v725, 127
        %v727 = vperm.slane %v708, %v726
        %v728 = vperm.slane %v709, %v726
        %v729 = vperm.slane %v710, %v726
        %v730 = vperm.slane %v711, %v726
        %v731 = vperm.slane %v712, %v726
        %v732 = vperm.slane %v713, %v726
        %v733 = vperm.slane %v714, %v726
        %v734 = vperm.slane %v715, %v726
        %vm735 = vcmask 1041409
        %v736 = vsel %vm735, %v728, %v727
        %vm737 = vcmask 1042434
        %v738 = vsel %vm737, %v729, %v736
        %vm739 = vcmask 1043459
        %v740 = vsel %vm739, %v730, %v738
        %vm741 = vcmask 1044484
        %v742 = vsel %vm741, %v731, %v740
        %vm743 = vcmask 1045509
        %v744 = vsel %vm743, %v732, %v742
        %vm745 = vcmask 1046534
        %v746 = vsel %vm745, %v733, %v744
        %vm747 = vcmask 1047559
        %v748 = vsel %vm747, %v734, %v746
        %vm750 = vcmask 64512
        %v751 = vsel %vm750, %v748, -inf
        %752 = vmax.xlane.f32.xlu0 %v751
        %v753 = vpop.xlane.xlu0 %752
        %v754 = vmax.f32 %v716, %v753
        %v755 = vsub.f32 %v716, %v754
        %v756 = vmul.f32 %v755, 1.442695
        %v757 = vpow.pop %v756
        %759 = vset.pattern.permute.xlu0 0
        %760 = vperm.xlu0 %759, %v754
        %v761 = vpop.permute.xlu0 %760
        %v762 = vperm.slane %v761, 0
        %v763 = vperm.slane %v761, 1
        %v764 = vperm.slane %v761, 2
        %v765 = vperm.slane %v761, 3
        %v766 = vperm.slane %v761, 4
        %v767 = vperm.slane %v761, 5
        %v768 = vperm.slane %v761, 6
        %v769 = vperm.slane %v761, 7
        %v778 = vsub.f32 %v708, %v762
        %v779 = vsub.f32 %v709, %v763
        %v780 = vsub.f32 %v710, %v764
        %v781 = vsub.f32 %v711, %v765
        %v782 = vsub.f32 %v712, %v766
        %v783 = vsub.f32 %v713, %v767
        %v784 = vsub.f32 %v714, %v768
        %v785 = vsub.f32 %v715, %v769
        %v786 = vmul.f32 %v778, 1.442695
        %v787 = vpow.pop %v786
        %v788 = vmul.f32 %v779, 1.442695
        %v789 = vpow.pop %v788
        %v790 = vmul.f32 %v780, 1.442695
        %v791 = vpow.pop %v790
        %v792 = vmul.f32 %v781, 1.442695
        %v793 = vpow.pop %v792
        %v794 = vmul.f32 %v782, 1.442695
        %v795 = vpow.pop %v794
        %v796 = vmul.f32 %v783, 1.442695
        %v797 = vpow.pop %v796
        %v798 = vmul.f32 %v784, 1.442695
        %v799 = vpow.pop %v798
        %v800 = vmul.f32 %v785, 1.442695
        %v801 = vpow.pop %v800
        %v802 = vld [vmem:[#allocation5] sm:$0xff]
        %v803 = vmul.f32 %v757, %v802
        %812 = vset.pattern.permute.xlu0 0
        %813 = vperm.xlu0 %812, %v787
        %v814 = vpop.permute.xlu0 %813
        %815 = vset.pattern.permute.xlu0 0
        %816 = vperm.xlu0 %815, %v789
        %v817 = vpop.permute.xlu0 %816
        %818 = vset.pattern.permute.xlu0 0
        %819 = vperm.xlu0 %818, %v791
        %v820 = vpop.permute.xlu0 %819
        %821 = vset.pattern.permute.xlu0 0
        %822 = vperm.xlu0 %821, %v793
        %v823 = vpop.permute.xlu0 %822
        %824 = vset.pattern.permute.xlu0 0
        %825 = vperm.xlu0 %824, %v795
        %v826 = vpop.permute.xlu0 %825
        %827 = vset.pattern.permute.xlu0 0
        %828 = vperm.xlu0 %827, %v797
        %v829 = vpop.permute.xlu0 %828
        %830 = vset.pattern.permute.xlu0 0
        %831 = vperm.xlu0 %830, %v799
        %v832 = vpop.permute.xlu0 %831
        %833 = vset.pattern.permute.xlu0 0
        %834 = vperm.xlu0 %833, %v801
        %v835 = vpop.permute.xlu0 %834
        %v836 = vperm.slane %v814, %v726
        %v837 = vperm.slane %v817, %v726
        %v838 = vperm.slane %v820, %v726
        %v839 = vperm.slane %v823, %v726
        %v840 = vperm.slane %v826, %v726
        %v841 = vperm.slane %v829, %v726
        %v842 = vperm.slane %v832, %v726
        %v843 = vperm.slane %v835, %v726
        %v844 = vsel %vm735, %v837, %v836
        %v845 = vsel %vm737, %v838, %v844
        %v846 = vsel %vm739, %v839, %v845
        %v847 = vsel %vm741, %v840, %v846
        %v848 = vsel %vm743, %v841, %v847
        %v849 = vsel %vm745, %v842, %v848
        %v850 = vsel %vm747, %v843, %v849
        %v852 = vsel %vm750, %v850, 0.0
        %853 = vadd.xlane.f32.xlu0 %v852
        %v854 = vpop.xlane.xlu0 %853
        %v855 = vadd.f32 %v803, %v854
        %vm856 = vcmask 7168
        %857 = vst.msk [vmem:[#allocation5] sm:$0xff] %vm856, %v855
        %v858 = vld [vmem:[#allocation6] sm:$0xff]
        %860 = vset.pattern.permute.xlu0 0
        %861 = vperm.xlu0 %860, %v757
        %v862 = vpop.permute.xlu0 %861
        %v864 = vmul.f32 %v862, %v858
        %v873 = vmul.f32 %v814, %v559
        %v874 = vmul.f32 %v817, %v560
        %v875 = vmul.f32 %v820, %v561
        %v876 = vmul.f32 %v823, %v562
        %v877 = vmul.f32 %v826, %v563
        %v878 = vmul.f32 %v829, %v564
        %v879 = vmul.f32 %v832, %v565
        %v880 = vmul.f32 %v835, %v566
        %v881 = vsel %vm571, %v873, 0.0
        %v882 = vrot.slane %v881, 4
        %v883 = vadd.f32 %v881, %v882
        %v884 = vrot.slane %v883, 2
        %v885 = vadd.f32 %v883, %v884
        %v886 = vrot.slane %v885, 1
        %v887 = vadd.f32 %v885, %v886
        %v888 = vsel %vm571, %v874, 0.0
        %v889 = vrot.slane %v888, 4
        %v890 = vadd.f32 %v888, %v889
        %v891 = vrot.slane %v890, 2
        %v892 = vadd.f32 %v890, %v891
        %v893 = vrot.slane %v892, 1
        %v894 = vadd.f32 %v892, %v893
        %v895 = vsel %vm571, %v875, 0.0
        %v896 = vrot.slane %v895, 4
        %v897 = vadd.f32 %v895, %v896
        %v898 = vrot.slane %v897, 2
        %v899 = vadd.f32 %v897, %v898
        %v900 = vrot.slane %v899, 1
        %v901 = vadd.f32 %v899, %v900
        %v902 = vsel %vm571, %v876, 0.0
        %v903 = vrot.slane %v902, 4
        %v904 = vadd.f32 %v902, %v903
        %v905 = vrot.slane %v904, 2
        %v906 = vadd.f32 %v904, %v905
        %v907 = vrot.slane %v906, 1
        %v908 = vadd.f32 %v906, %v907
        %v909 = vsel %vm571, %v877, 0.0
        %v910 = vrot.slane %v909, 4
        %v911 = vadd.f32 %v909, %v910
        %v912 = vrot.slane %v911, 2
        %v913 = vadd.f32 %v911, %v912
        %v914 = vrot.slane %v913, 1
        %v915 = vadd.f32 %v913, %v914
        %v916 = vsel %vm571, %v878, 0.0
        %v917 = vrot.slane %v916, 4
        %v918 = vadd.f32 %v916, %v917
        %v919 = vrot.slane %v918, 2
        %v920 = vadd.f32 %v918, %v919
        %v921 = vrot.slane %v920, 1
        %v922 = vadd.f32 %v920, %v921
        %v923 = vsel %vm571, %v879, 0.0
        %v924 = vrot.slane %v923, 4
        %v925 = vadd.f32 %v923, %v924
        %v926 = vrot.slane %v925, 2
        %v927 = vadd.f32 %v925, %v926
        %v928 = vrot.slane %v927, 1
        %v929 = vadd.f32 %v927, %v928
        %v930 = vsel %vm571, %v880, 0.0
        %v931 = vrot.slane %v930, 4
        %v932 = vadd.f32 %v930, %v931
        %v933 = vrot.slane %v932, 2
        %v934 = vadd.f32 %v932, %v933
        %v935 = vrot.slane %v934, 1
        %v936 = vadd.f32 %v934, %v935
        %v945 = vsel %vm735, %v894, %v887
        %v946 = vsel %vm737, %v901, %v945
        %v947 = vsel %vm739, %v908, %v946
        %v948 = vsel %vm741, %v915, %v947
        %v949 = vsel %vm743, %v922, %v948
        %v950 = vsel %vm745, %v929, %v949
        %v951 = vsel %vm747, %v936, %v950
        %v953 = vadd.f32 %v864, %v951
        %954 = vst.msk [vmem:[#allocation6] sm:$0xff] %vm571, %v953
        %955 = vst.msk [vmem:[#allocation4] sm:$0xff] %vm856, %v754
        // Predicated region
        $region89: #{tpu_custom_call.1} parent=55 // pred_check
          %p956 = pneg %p510
        $region90: #{tpu_custom_call.1} parent=55 // pred_check_branch
          %958 = sbr.rel (%p956) target = $region92
        $region91: #{tpu_custom_call.1} parent=55 // pred_region
          %v959 = vld [vmem:[#allocation6] sm:$0xff]
          %v960 = vld [vmem:[#allocation5] sm:$0xff]
          %962 = vset.pattern.permute.xlu0 0
          %963 = vperm.xlu0 %962, %v960
          %v964 = vpop.permute.xlu0 %963
          %v966 = vrcp.pop %v964
          %v967 = vmul.f32 %v964, %v966
          %v968 = vsub.f32 1.0, %v967
          %v969 = vmul.f32 %v966, %v968
          %v970 = vadd.f32 %v966, %v969
          %vm971 = vweird.f32 %v964
          %vm972 = vweird.f32 %v966
          %vm973 = vmor %vm971, %vm972
          %v974 = vsel %vm973, %v966, %v970
          %v975 = vand.u32 2147483647, %v964
          %vm976 = vcmp.eq.f32.partialorder %v975, 8.507059e+37
          %v977 = vand.u32 %v964, 2147483648
          %v978 = vor.u32 1.1754944e-38, %v977
          %v979 = vsel %vm976, %v978, %v974
          %v980 = vmul.f32 %v959, %v979
          %v981 = vld [vmem:[#allocation2] sm:$0xff]
          %v982 = vadd.f32 %v981, %v980
          %983 = vst.msk [vmem:[#allocation2] sm:$0xff] %vm571, %v982
          %p984 = scmp.eq.s32.totalorder %s30, 1
          // Predicated region
          $region93: #{tpu_custom_call.1} parent=91 // pred_check
            %p985 = pneg %p984
          $region94: #{tpu_custom_call.1} parent=91 // pred_check_branch
            %987 = sbr.rel (%p985) target = $region96
          $region95: #{tpu_custom_call.1} parent=91 // pred_region
            %v988 = vld [vmem:[#allocation2] sm:$0xff]
            %v989 = vld [vmem:[#allocation16] sm:$0xff]
            %v990 = vld [vmem:[#allocation16 + $0x8] sm:$0xff]
            %v991 = vld [vmem:[#allocation16 + $0x10] sm:$0xff]
            %v992 = vld [vmem:[#allocation16 + $0x18] sm:$0xff]
            %v993 = vld [vmem:[%s8] sm:$0x1]
            %v995 = vperm.slane %v993, 0
            %v998 = vsel %vm571, %v988, 0
            %1000 = vmatpush.msra.mxu0 0.0
            %1001 = vmatpush.msra.mxu0 0.0
            %1002 = vmatpush.msra.mxu0 0.0
            %1003 = vmatpush.msra.mxu0 0.0
            %1004 = vmatpush.msra.mxu0 0.0
            %1005 = vmatpush.msra.mxu0 0.0
            %1006 = vmatpush.msra.mxu0 0.0
            %1007 = vmatpush.msra.mxu0 0.0
            %1008 = vmatpush.msra.mxu0 0.0
            %1009 = vmatpush.msra.mxu0 0.0
            %1010 = vmatpush.msra.mxu0 0.0
            %1011 = vmatpush.msra.mxu0 0.0
            %1012 = vmatpush.msra.mxu0 %v992
            %1013 = vmatpush.msra.mxu0 %v991
            %1014 = vmatpush.msra.mxu0 %v990
            %1015 = vmatpush.msra.mxu0 %v989
            %1016 = vmatmul.f32.gmra.mxu0 %v998
            %v1017 = vpop.f32.mrf.mxu0
            %v1018 = vadd.f32 %v995, %v1017
            %1019 = vdwg.mxu0
            %1020 = vst [vmem:[#allocation17] sm:$0xff] %v1018
          $region96: #{tpu_custom_call.1} parent=91 // pred_fallthru
            _
        $region92: #{tpu_custom_call.1} parent=55 // pred_fallthru
          _
        // Predicated region
        $region97: #{tpu_custom_call.1} parent=55 // pred_check
          %p1021 = pneg %p282
        $region98: #{tpu_custom_call.1} parent=55 // pred_check_branch
          %1023 = sbr.rel (%p1021) target = $region100
        $region99: #{tpu_custom_call.1} parent=55 // pred_region
          %1025 = vsyncadd [#allocation9], 0
          %s1026 = smul.addr %s29, 8
          %s1027 = scalar_lea.hbm %s9, %s1026
          %s1029 = sshll.u32 [#allocation17], 4
          %s1030 = int_to_ptr.vmem [resolvable:$true] %s1029
          %s1031 = sshll.u32 %s1027, 4
          %s1032 = int_to_ptr.hbm [resolvable:$true] %s1031
          %1034 = dma.vmem_to_hbm [thread:$0]  %s1030, 128, %s1032, [#allocation9]
        $region100: #{tpu_custom_call.1} parent=55 // pred_fallthru
          _
        // Predicated region
        $region101: #{tpu_custom_call.1} parent=55 // pred_check
          %p1035 = pneg %p282
        $region102: #{tpu_custom_call.1} parent=55 // pred_check_branch
          %1037 = sbr.rel (%p1035) target = $region104
        $region103: #{tpu_custom_call.1} parent=55 // pred_region
          %1039 = dma.done [#allocation9], 128
        $region104: #{tpu_custom_call.1} parent=55 // pred_fallthru
          _
      $region56: #{tpu_custom_call.1} parent=5 // pred_fallthru
        _
      %p1040 = scmp.le.s32.totalorder 2, %s19
      // Predicated region
      $region105: #{tpu_custom_call.1} parent=5 // pred_check
        %p1041 = pneg %p1040
      $region106: #{tpu_custom_call.1} parent=5 // pred_check_branch
        %1043 = sbr.rel (%p1041) target = $region108
      $region107: #{tpu_custom_call.1} parent=5 // pred_region
        %s1044 = ssub.s32 %s19, 2
      $region108: #{tpu_custom_call.1} parent=5 // pred_fallthru
        _
    $region6: #{tpu_custom_call.1} parent=1 // loop_footer
      %s23 = sadd.s32 1, %s19
    $region7: #{tpu_custom_call.1} parent=1 // loop_footer_branch
      %18 = sbr.rel target = $region3
    $region8: #{tpu_custom_call.1} parent=1 // loop_exit
      _
    %1045 = vsyncpa [#allocation8], 1
    %s1046 = scalar_lea.sflag [#allocation8], 1
    %1047 = vsyncpa %s1046, 1
    %1048 = vsyncpa [#allocation12], 1
    %1049 = vsyncpa [#allocation9], 1
    %s1050 = scalar_lea.sflag [#allocation9], 1
    %1051 = vsyncpa %s1050, 1
    %1052 = vsyncpa [#allocation10], 1
    %s1053 = scalar_lea.sflag [#allocation10], 1
    %1054 = vsyncpa %s1053, 1

</llo_original>
